<compile_context>
chip_gen: v5e
topology: v5e:2x2
jax: 0.10.0
libtpu: 0.0.40
codegen_flags: <defaults>
</compile_context>

<pallas_src>
import functools

import numpy as np
import jax
import jax.numpy as jnp
from jax.experimental import pallas as pl
from jax.experimental.pallas import tpu as pltpu  # noqa: F401  (TPU backend)

_LN_EPS = 1e-5      # PyTorch nn.LayerNorm default
_NEG_INF = -1e30    # additive mask value (finite to keep VPU math inf-free)


def _layer_norm(y, gamma, beta):
    mu = jnp.mean(y, axis=-1, keepdims=True)
    var = jnp.mean((y - mu) ** 2, axis=-1, keepdims=True)
    return (y - mu) * jax.lax.rsqrt(var + _LN_EPS) * gamma + beta


# ------------------------------ fused kernel ------------------------------- #

def _encoder_kernel(x_ref, wqkv_ref, bqkv_ref, bias_ref,
                    wo_ref, bo_ref, g1_ref, be1_ref,
                    w1_ref, b1_ref, w2_ref, b2_ref, g2_ref, be2_ref,
                    o_ref, *, R, M, H, D, scale):
    x = x_ref[...]                                              # (R, M)

    # -- fused QKV projection: one (R,M)@(M,3M) MXU matmul ------------------
    qkv = jnp.dot(x, wqkv_ref[...], preferred_element_type=jnp.float32)
    qkv = qkv + bqkv_ref[...]                                   # (R, 3M)

    q = qkv[:, 0 * M:1 * M] * scale                             # fold 1/sqrt(D)
    k = qkv[:, 1 * M:2 * M]
    v = qkv[:, 2 * M:3 * M]

    # -- quirky PyTorch head-split view, realised with static slices --------
    # Element (r, j*D+d) of the (R, M) matrix belongs to group (r*H+j)//L of
    # the .view(B*H, L, D).  We stack the H column blocks vertically (permuted
    # row order i' = j*R + r); the additive block mask keeps softmax groups
    # intact, so no row-interleaving relayout is needed.
    q_s = jnp.concatenate([q[:, j * D:(j + 1) * D] for j in range(H)], axis=0)
    k_s = jnp.concatenate([k[:, j * D:(j + 1) * D] for j in range(H)], axis=0)
    v_s = jnp.concatenate([v[:, j * D:(j + 1) * D] for j in range(H)], axis=0)

    # -- single masked (H*R, H*R) score matmul + stable softmax -------------
    s = jax.lax.dot_general(q_s, k_s, (((1,), (1,)), ((), ())),
                            preferred_element_type=jnp.float32)  # q @ k^T
    s = s + bias_ref[...]                                        # block-diag mask
    s = s - jnp.max(s, axis=-1, keepdims=True)
    p = jnp.exp(s)
    # EUP approx reciprocal (~2^-12 rel err) -> softmax denominator is free.
    p = p * pl.reciprocal(jnp.sum(p, axis=-1, keepdims=True), approx=True)
    ctx_s = jnp.dot(p, v_s, preferred_element_type=jnp.float32)  # (H*R, D)

    # inverse of the quirky view: horizontal concat of the H vertical blocks
    ctx = jnp.concatenate([ctx_s[j * R:(j + 1) * R, :] for j in range(H)],
                          axis=1)                                # (R, M)

    # -- out-proj + residual + LN1 + FFN + residual + LN2 --------------------
    y = jnp.dot(ctx, wo_ref[...], preferred_element_type=jnp.float32)
    y = _layer_norm(y + bo_ref[...] + x, g1_ref[...], be1_ref[...])
    h = jnp.dot(y, w1_ref[...], preferred_element_type=jnp.float32) + b1_ref[...]
    h = jnp.maximum(h, 0.0)
    z = jnp.dot(h, w2_ref[...], preferred_element_type=jnp.float32) + b2_ref[...]
    o_ref[...] = _layer_norm(z + y, g2_ref[...], be2_ref[...]).astype(o_ref.dtype)


# ------------------------------ wrappers ------------------------------------ #

def prepare_params(params, *, batch, seq_len, dim_model, num_head):
    """One-time preprocessing: fuse QKV weights, reshape biases, build the
    additive block-diagonal attention mask (hoisted out of the jitted fwd)."""
    M = dim_model
    H = num_head
    L = seq_len
    R = batch * seq_len
    # group of permuted row i' = j*R + r  is  (r*H + j) // L
    idx = np.arange(H * R)
    grp = ((idx % R) * H + (idx // R)) // L
    bias = np.where(grp[:, None] == grp[None, :], 0.0, _NEG_INF).astype(np.float32)
    return {
        "w_qkv": jnp.concatenate([params["wq"], params["wk"], params["wv"]], axis=1),
        "b_qkv": jnp.concatenate([params["bq"], params["bk"], params["bv"]]).reshape(1, 3 * M),
        "attn_bias": jnp.asarray(bias),
        "wo": params["wo"], "bo": params["bo"].reshape(1, M),
        "ln1_g": params["ln1_g"].reshape(1, M), "ln1_b": params["ln1_b"].reshape(1, M),
        "w1": params["w1"], "b1": params["b1"].reshape(1, -1),
        "w2": params["w2"], "b2": params["b2"].reshape(1, M),
        "ln2_g": params["ln2_g"].reshape(1, M), "ln2_b": params["ln2_b"].reshape(1, M),
    }


@functools.partial(jax.jit, static_argnames=("num_head",))
def encoder_forward(prepared, x, num_head):
    """Faithful reproduction of Encoder.forward (eval-mode dropout), one pallas_call."""
    B, L, M = x.shape
    H = num_head
    D = M // H
    R = B * L
    x2d = x.reshape(R, M)
    kernel = functools.partial(_encoder_kernel, R=R, M=M, H=H, D=D,
                               scale=float(D) ** (-0.5))
    out2d = pl.pallas_call(
        kernel,
        out_shape=jax.ShapeDtypeStruct((R, M), x.dtype),
    )(x2d, prepared["w_qkv"], prepared["b_qkv"], prepared["attn_bias"],
      prepared["wo"], prepared["bo"], prepared["ln1_g"], prepared["ln1_b"],
      prepared["w1"], prepared["b1"], prepared["w2"], prepared["b2"],
      prepared["ln2_g"], prepared["ln2_b"])
    return out2d.reshape(B, L, M)


# ------------------------------- reference ---------------------------------- #

def encoder_reference(params, x, num_head):
    """Pure-JAX reference mirroring the PyTorch code, for correctness check."""
    B, L, M = x.shape
    dim_head = M // num_head
    q = x @ params["wq"] + params["bq"]
    k = x @ params["wk"] + params["bk"]
    v = x @ params["wv"] + params["bv"]
    q = q.reshape(B * num_head, L, dim_head)
    k = k.reshape(B * num_head, L, dim_head)
    v = v.reshape(B * num_head, L, dim_head)
    scale = float(dim_head) ** (-0.5)
    attn = jnp.einsum("bqd,bkd->bqk", q, k) * scale
    attn = jax.nn.softmax(attn, axis=-1)
    context = jnp.einsum("bqk,bkd->bqd", attn, v).reshape(B, L, M)

    def ln(y, g, b):
        mu = jnp.mean(y, axis=-1, keepdims=True)
        var = jnp.mean((y - mu) ** 2, axis=-1, keepdims=True)
        return (y - mu) * jax.lax.rsqrt(var + _LN_EPS) * g + b

    o = ln(context @ params["wo"] + params["bo"] + x, params["ln1_g"], params["ln1_b"])
    h = jnp.maximum(o @ params["w1"] + params["b1"], 0.0)
    return ln(h @ params["w2"] + params["b2"] + o, params["ln2_g"], params["ln2_b"])


def init_params(key, dim_model, hidden):
    ks = jax.random.split(key, 6)
    s = 0.05
    f32 = jnp.float32
    return {
        "wq": jax.random.normal(ks[0], (dim_model, dim_model), f32) * s,
        "bq": jnp.zeros((dim_model,), f32),
        "wk": jax.random.normal(ks[1], (dim_model, dim_model), f32) * s,
        "bk": jnp.zeros((dim_model,), f32),
        "wv": jax.random.normal(ks[2], (dim_model, dim_model), f32) * s,
        "bv": jnp.zeros((dim_model,), f32),
        "wo": jax.random.normal(ks[3], (dim_model, dim_model), f32) * s,
        "bo": jnp.zeros((dim_model,), f32),
        "ln1_g": jnp.ones((dim_model,), f32),
        "ln1_b": jnp.zeros((dim_model,), f32),
        "w1": jax.random.normal(ks[4], (dim_model, hidden), f32) * s,
        "b1": jnp.zeros((hidden,), f32),
        "w2": jax.random.normal(ks[5], (hidden, dim_model), f32) * s,
        "b2": jnp.zeros((dim_model,), f32),
        "ln2_g": jnp.ones((dim_model,), f32),
        "ln2_b": jnp.zeros((dim_model,), f32),
    }


if __name__ == "__main__":
    B, L = 2, 8
    dim_model, num_head, hidden = 32, 4, 64

    root = jax.random.PRNGKey(0)
    kp, kx = jax.random.split(root)
    params = init_params(kp, dim_model, hidden)
    x = jax.random.normal(kx, (B, L, dim_model), jnp.float32)

    prepared = prepare_params(params, batch=B, seq_len=L,
                              dim_model=dim_model, num_head=num_head)

    out = jax.block_until_ready(encoder_forward(prepared, x, num_head))
    ref = encoder_reference(params, x, num_head)

    assert out.shape == (B, L, dim_model)
    # Tolerance covers the EUP approx reciprocal (~2^-12 rel err) in softmax.
    assert jnp.allclose(out, ref, atol=2e-3, rtol=2e-3), "mismatch vs reference"
    print("KERNEL_OK")
</pallas_src>

<mosaic_0001>
module attributes {stable_mosaic.version = 11 : i64} {
  func.func @_encoder_kernel(%arg0: memref<16x32xf32, #tpu.memory_space<vmem>>, %arg1: memref<32x96xf32, #tpu.memory_space<vmem>>, %arg2: memref<1x96xf32, #tpu.memory_space<vmem>>, %arg3: memref<64x64xf32, #tpu.memory_space<vmem>>, %arg4: memref<32x32xf32, #tpu.memory_space<vmem>>, %arg5: memref<1x32xf32, #tpu.memory_space<vmem>>, %arg6: memref<1x32xf32, #tpu.memory_space<vmem>>, %arg7: memref<1x32xf32, #tpu.memory_space<vmem>>, %arg8: memref<32x64xf32, #tpu.memory_space<vmem>>, %arg9: memref<1x64xf32, #tpu.memory_space<vmem>>, %arg10: memref<64x32xf32, #tpu.memory_space<vmem>>, %arg11: memref<1x32xf32, #tpu.memory_space<vmem>>, %arg12: memref<1x32xf32, #tpu.memory_space<vmem>>, %arg13: memref<1x32xf32, #tpu.memory_space<vmem>>, %arg14: memref<16x32xf32, #tpu.memory_space<vmem>>) attributes {dimension_semantics = [], scalar_prefetch = 0 : i64, scratch_operands = 0 : i64, tpu.core_type = #tpu.core_type<tc>} {
    %c0 = arith.constant 0 : index
    %c0_0 = arith.constant 0 : index
    %0 = vector.load %arg0[%c0, %c0_0] : memref<16x32xf32, #tpu.memory_space<vmem>>, vector<16x32xf32>
    %c0_1 = arith.constant 0 : index
    %c0_2 = arith.constant 0 : index
    %1 = vector.load %arg1[%c0_1, %c0_2] : memref<32x96xf32, #tpu.memory_space<vmem>>, vector<32x96xf32>
    %cst = arith.constant dense<0.000000e+00> : vector<16x96xf32>
    %2 = tpu.matmul %0, %1, %cst {dimension_numbers = #tpu.dot_dimension_numbers<[1], [0], [0], [1], [0, 0, 1, 1], [], []>} : vector<16x32xf32>, vector<32x96xf32>, vector<16x96xf32> -> vector<16x96xf32>
    %c0_3 = arith.constant 0 : index
    %c0_4 = arith.constant 0 : index
    %3 = vector.load %arg2[%c0_3, %c0_4] : memref<1x96xf32, #tpu.memory_space<vmem>>, vector<1x96xf32>
    %4 = vector.broadcast %3 : vector<1x96xf32> to vector<16x96xf32>
    %5 = arith.addf %2, %4 : vector<16x96xf32>
    %6 = vector.extract_strided_slice %5 {offsets = [0, 0], sizes = [16, 32], strides = [1, 1]} : vector<16x96xf32> to vector<16x32xf32>
    %cst_5 = arith.constant 0.353553385 : f32
    %7 = vector.broadcast %cst_5 : f32 to vector<16x32xf32>
    %8 = arith.mulf %6, %7 : vector<16x32xf32>
    %9 = vector.extract_strided_slice %5 {offsets = [0, 32], sizes = [16, 32], strides = [1, 1]} : vector<16x96xf32> to vector<16x32xf32>
    %10 = vector.extract_strided_slice %5 {offsets = [0, 64], sizes = [16, 32], strides = [1, 1]} : vector<16x96xf32> to vector<16x32xf32>
    %11 = vector.extract_strided_slice %8 {offsets = [0, 0], sizes = [16, 8], strides = [1, 1]} : vector<16x32xf32> to vector<16x8xf32>
    %12 = vector.extract_strided_slice %8 {offsets = [0, 8], sizes = [16, 8], strides = [1, 1]} : vector<16x32xf32> to vector<16x8xf32>
    %13 = vector.extract_strided_slice %8 {offsets = [0, 16], sizes = [16, 8], strides = [1, 1]} : vector<16x32xf32> to vector<16x8xf32>
    %14 = vector.extract_strided_slice %8 {offsets = [0, 24], sizes = [16, 8], strides = [1, 1]} : vector<16x32xf32> to vector<16x8xf32>
    %15 = tpu.concatenate %11, %12, %13, %14 in 0 : vector<16x8xf32>, vector<16x8xf32>, vector<16x8xf32>, vector<16x8xf32> -> vector<64x8xf32>
    %16 = vector.extract_strided_slice %9 {offsets = [0, 0], sizes = [16, 8], strides = [1, 1]} : vector<16x32xf32> to vector<16x8xf32>
    %17 = vector.extract_strided_slice %9 {offsets = [0, 8], sizes = [16, 8], strides = [1, 1]} : vector<16x32xf32> to vector<16x8xf32>
    %18 = vector.extract_strided_slice %9 {offsets = [0, 16], sizes = [16, 8], strides = [1, 1]} : vector<16x32xf32> to vector<16x8xf32>
    %19 = vector.extract_strided_slice %9 {offsets = [0, 24], sizes = [16, 8], strides = [1, 1]} : vector<16x32xf32> to vector<16x8xf32>
    %20 = tpu.concatenate %16, %17, %18, %19 in 0 : vector<16x8xf32>, vector<16x8xf32>, vector<16x8xf32>, vector<16x8xf32> -> vector<64x8xf32>
    %21 = vector.extract_strided_slice %10 {offsets = [0, 0], sizes = [16, 8], strides = [1, 1]} : vector<16x32xf32> to vector<16x8xf32>
    %22 = vector.extract_strided_slice %10 {offsets = [0, 8], sizes = [16, 8], strides = [1, 1]} : vector<16x32xf32> to vector<16x8xf32>
    %23 = vector.extract_strided_slice %10 {offsets = [0, 16], sizes = [16, 8], strides = [1, 1]} : vector<16x32xf32> to vector<16x8xf32>
    %24 = vector.extract_strided_slice %10 {offsets = [0, 24], sizes = [16, 8], strides = [1, 1]} : vector<16x32xf32> to vector<16x8xf32>
    %25 = tpu.concatenate %21, %22, %23, %24 in 0 : vector<16x8xf32>, vector<16x8xf32>, vector<16x8xf32>, vector<16x8xf32> -> vector<64x8xf32>
    %cst_6 = arith.constant dense<0.000000e+00> : vector<64x64xf32>
    %26 = tpu.matmul %15, %20, %cst_6 {dimension_numbers = #tpu.dot_dimension_numbers<[1], [1], [0], [0], [0, 0, 1, 0], [], []>} : vector<64x8xf32>, vector<64x8xf32>, vector<64x64xf32> -> vector<64x64xf32>
    %c0_7 = arith.constant 0 : index
    %c0_8 = arith.constant 0 : index
    %27 = vector.load %arg3[%c0_7, %c0_8] : memref<64x64xf32, #tpu.memory_space<vmem>>, vector<64x64xf32>
    %28 = arith.addf %26, %27 : vector<64x64xf32>
    %cst_9 = arith.constant dense<0xFF800000> : vector<64xf32>
    %29 = vector.multi_reduction <maximumf>, %28, %cst_9 [1] : vector<64x64xf32> to vector<64xf32>
    %30 = vector.shape_cast %29 : vector<64xf32> to vector<64x1xf32>
    %31 = vector.broadcast %30 : vector<64x1xf32> to vector<64x64xf32>
    %32 = arith.subf %28, %31 : vector<64x64xf32>
    %33 = math.exp %32 : vector<64x64xf32>
    %cst_10 = arith.constant dense<0.000000e+00> : vector<64xf32>
    %34 = vector.multi_reduction <add>, %33, %cst_10 [1] : vector<64x64xf32> to vector<64xf32>
    %35 = vector.shape_cast %34 : vector<64xf32> to vector<64x1xf32>
    %36 = tpu.reciprocal %35 {approx = true} : vector<64x1xf32> -> vector<64x1xf32>
    %37 = vector.broadcast %36 : vector<64x1xf32> to vector<64x64xf32>
    %38 = arith.mulf %33, %37 : vector<64x64xf32>
    %cst_11 = arith.constant dense<0.000000e+00> : vector<64x8xf32>
    %39 = tpu.matmul %38, %25, %cst_11 {dimension_numbers = #tpu.dot_dimension_numbers<[1], [0], [0], [1], [0, 0, 1, 1], [], []>} : vector<64x64xf32>, vector<64x8xf32>, vector<64x8xf32> -> vector<64x8xf32>
    %40 = vector.extract_strided_slice %39 {offsets = [0, 0], sizes = [16, 8], strides = [1, 1]} : vector<64x8xf32> to vector<16x8xf32>
    %41 = vector.extract_strided_slice %39 {offsets = [16, 0], sizes = [16, 8], strides = [1, 1]} : vector<64x8xf32> to vector<16x8xf32>
    %42 = vector.extract_strided_slice %39 {offsets = [32, 0], sizes = [16, 8], strides = [1, 1]} : vector<64x8xf32> to vector<16x8xf32>
    %43 = vector.extract_strided_slice %39 {offsets = [48, 0], sizes = [16, 8], strides = [1, 1]} : vector<64x8xf32> to vector<16x8xf32>
    %44 = tpu.concatenate %40, %41, %42, %43 in 1 : vector<16x8xf32>, vector<16x8xf32>, vector<16x8xf32>, vector<16x8xf32> -> vector<16x32xf32>
    %c0_12 = arith.constant 0 : index
    %c0_13 = arith.constant 0 : index
    %45 = vector.load %arg4[%c0_12, %c0_13] : memref<32x32xf32, #tpu.memory_space<vmem>>, vector<32x32xf32>
    %cst_14 = arith.constant dense<0.000000e+00> : vector<16x32xf32>
    %46 = tpu.matmul %44, %45, %cst_14 {dimension_numbers = #tpu.dot_dimension_numbers<[1], [0], [0], [1], [0, 0, 1, 1], [], []>} : vector<16x32xf32>, vector<32x32xf32>, vector<16x32xf32> -> vector<16x32xf32>
    %c0_15 = arith.constant 0 : index
    %c0_16 = arith.constant 0 : index
    %47 = vector.load %arg5[%c0_15, %c0_16] : memref<1x32xf32, #tpu.memory_space<vmem>>, vector<1x32xf32>
    %48 = vector.broadcast %47 : vector<1x32xf32> to vector<16x32xf32>
    %49 = arith.addf %46, %48 : vector<16x32xf32>
    %50 = arith.addf %49, %0 : vector<16x32xf32>
    %c0_17 = arith.constant 0 : index
    %c0_18 = arith.constant 0 : index
    %51 = vector.load %arg6[%c0_17, %c0_18] : memref<1x32xf32, #tpu.memory_space<vmem>>, vector<1x32xf32>
    %c0_19 = arith.constant 0 : index
    %c0_20 = arith.constant 0 : index
    %52 = vector.load %arg7[%c0_19, %c0_20] : memref<1x32xf32, #tpu.memory_space<vmem>>, vector<1x32xf32>
    %cst_21 = arith.constant dense<0.000000e+00> : vector<16xf32>
    %53 = vector.multi_reduction <add>, %50, %cst_21 [1] : vector<16x32xf32> to vector<16xf32>
    %54 = vector.shape_cast %53 : vector<16xf32> to vector<16x1xf32>
    %cst_22 = arith.constant 3.200000e+01 : f32
    %55 = vector.broadcast %cst_22 : f32 to vector<16x1xf32>
    %56 = arith.divf %54, %55 : vector<16x1xf32>
    %57 = vector.broadcast %56 : vector<16x1xf32> to vector<16x32xf32>
    %58 = arith.subf %50, %57 : vector<16x32xf32>
    %59 = arith.mulf %58, %58 : vector<16x32xf32>
    %cst_23 = arith.constant dense<0.000000e+00> : vector<16xf32>
    %60 = vector.multi_reduction <add>, %59, %cst_23 [1] : vector<16x32xf32> to vector<16xf32>
    %61 = vector.shape_cast %60 : vector<16xf32> to vector<16x1xf32>
    %cst_24 = arith.constant 3.200000e+01 : f32
    %62 = vector.broadcast %cst_24 : f32 to vector<16x1xf32>
    %63 = arith.divf %61, %62 : vector<16x1xf32>
    %64 = vector.broadcast %56 : vector<16x1xf32> to vector<16x32xf32>
    %65 = arith.subf %50, %64 : vector<16x32xf32>
    %cst_25 = arith.constant 9.99999974E-6 : f32
    %66 = vector.broadcast %cst_25 : f32 to vector<16x1xf32>
    %67 = arith.addf %63, %66 : vector<16x1xf32>
    %68 = math.rsqrt %67 : vector<16x1xf32>
    %69 = vector.broadcast %68 : vector<16x1xf32> to vector<16x32xf32>
    %70 = arith.mulf %65, %69 : vector<16x32xf32>
    %71 = vector.broadcast %51 : vector<1x32xf32> to vector<16x32xf32>
    %72 = arith.mulf %70, %71 : vector<16x32xf32>
    %73 = vector.broadcast %52 : vector<1x32xf32> to vector<16x32xf32>
    %74 = arith.addf %72, %73 : vector<16x32xf32>
    %c0_26 = arith.constant 0 : index
    %c0_27 = arith.constant 0 : index
    %75 = vector.load %arg8[%c0_26, %c0_27] : memref<32x64xf32, #tpu.memory_space<vmem>>, vector<32x64xf32>
    %cst_28 = arith.constant dense<0.000000e+00> : vector<16x64xf32>
    %76 = tpu.matmul %74, %75, %cst_28 {dimension_numbers = #tpu.dot_dimension_numbers<[1], [0], [0], [1], [0, 0, 1, 1], [], []>} : vector<16x32xf32>, vector<32x64xf32>, vector<16x64xf32> -> vector<16x64xf32>
    %c0_29 = arith.constant 0 : index
    %c0_30 = arith.constant 0 : index
    %77 = vector.load %arg9[%c0_29, %c0_30] : memref<1x64xf32, #tpu.memory_space<vmem>>, vector<1x64xf32>
    %78 = vector.broadcast %77 : vector<1x64xf32> to vector<16x64xf32>
    %79 = arith.addf %76, %78 : vector<16x64xf32>
    %cst_31 = arith.constant 0.000000e+00 : f32
    %80 = vector.broadcast %cst_31 : f32 to vector<16x64xf32>
    %81 = arith.maximumf %79, %80 : vector<16x64xf32>
    %c0_32 = arith.constant 0 : index
    %c0_33 = arith.constant 0 : index
    %82 = vector.load %arg10[%c0_32, %c0_33] : memref<64x32xf32, #tpu.memory_space<vmem>>, vector<64x32xf32>
    %cst_34 = arith.constant dense<0.000000e+00> : vector<16x32xf32>
    %83 = tpu.matmul %81, %82, %cst_34 {dimension_numbers = #tpu.dot_dimension_numbers<[1], [0], [0], [1], [0, 0, 1, 1], [], []>} : vector<16x64xf32>, vector<64x32xf32>, vector<16x32xf32> -> vector<16x32xf32>
    %c0_35 = arith.constant 0 : index
    %c0_36 = arith.constant 0 : index
    %84 = vector.load %arg11[%c0_35, %c0_36] : memref<1x32xf32, #tpu.memory_space<vmem>>, vector<1x32xf32>
    %85 = vector.broadcast %84 : vector<1x32xf32> to vector<16x32xf32>
    %86 = arith.addf %83, %85 : vector<16x32xf32>
    %87 = arith.addf %86, %74 : vector<16x32xf32>
    %c0_37 = arith.constant 0 : index
    %c0_38 = arith.constant 0 : index
    %88 = vector.load %arg12[%c0_37, %c0_38] : memref<1x32xf32, #tpu.memory_space<vmem>>, vector<1x32xf32>
    %c0_39 = arith.constant 0 : index
    %c0_40 = arith.constant 0 : index
    %89 = vector.load %arg13[%c0_39, %c0_40] : memref<1x32xf32, #tpu.memory_space<vmem>>, vector<1x32xf32>
    %cst_41 = arith.constant dense<0.000000e+00> : vector<16xf32>
    %90 = vector.multi_reduction <add>, %87, %cst_41 [1] : vector<16x32xf32> to vector<16xf32>
    %91 = vector.shape_cast %90 : vector<16xf32> to vector<16x1xf32>
    %cst_42 = arith.constant 3.200000e+01 : f32
    %92 = vector.broadcast %cst_42 : f32 to vector<16x1xf32>
    %93 = arith.divf %91, %92 : vector<16x1xf32>
    %94 = vector.broadcast %93 : vector<16x1xf32> to vector<16x32xf32>
    %95 = arith.subf %87, %94 : vector<16x32xf32>
    %96 = arith.mulf %95, %95 : vector<16x32xf32>
    %cst_43 = arith.constant dense<0.000000e+00> : vector<16xf32>
    %97 = vector.multi_reduction <add>, %96, %cst_43 [1] : vector<16x32xf32> to vector<16xf32>
    %98 = vector.shape_cast %97 : vector<16xf32> to vector<16x1xf32>
    %cst_44 = arith.constant 3.200000e+01 : f32
    %99 = vector.broadcast %cst_44 : f32 to vector<16x1xf32>
    %100 = arith.divf %98, %99 : vector<16x1xf32>
    %101 = vector.broadcast %93 : vector<16x1xf32> to vector<16x32xf32>
    %102 = arith.subf %87, %101 : vector<16x32xf32>
    %cst_45 = arith.constant 9.99999974E-6 : f32
    %103 = vector.broadcast %cst_45 : f32 to vector<16x1xf32>
    %104 = arith.addf %100, %103 : vector<16x1xf32>
    %105 = math.rsqrt %104 : vector<16x1xf32>
    %106 = vector.broadcast %105 : vector<16x1xf32> to vector<16x32xf32>
    %107 = arith.mulf %102, %106 : vector<16x32xf32>
    %108 = vector.broadcast %88 : vector<1x32xf32> to vector<16x32xf32>
    %109 = arith.mulf %107, %108 : vector<16x32xf32>
    %110 = vector.broadcast %89 : vector<1x32xf32> to vector<16x32xf32>
    %111 = arith.addf %109, %110 : vector<16x32xf32>
    %c0_46 = arith.constant 0 : index
    %c0_47 = arith.constant 0 : index
    %112 = vector.load %arg14[%c0_46, %c0_47] : memref<16x32xf32, #tpu.memory_space<vmem>>, vector<16x32xf32>
    tpu.vector_store %arg14[%c0_46, %c0_47], %111 {strides = array<i32>} : memref<16x32xf32, #tpu.memory_space<vmem>>, vector<16x32xf32>,
    return
  }
}

</mosaic_0001>

<llo_original>
// kernel: encoder_forward.1
$region0: #{encoder_forward.1}
  #allocation0 [shape = 'u32[]', space=smem, size = 0x4, offset = 0x4, fixed_abs, tag = 'smem constant byte address 0x4 - core index']
  #allocation1 [shape = 'u32[72,128]{1,0:T(1,128)}', space=vmem, size = 0x9000, scoped, tag = 'internal scratch']
  %s0 = inlined_call_operand.hbm [shape: f32[16,32], index: 0, kind: input, shape index: {}]
  %s1 = inlined_call_operand.vmem [shape: f32[32,96], index: 1, kind: input, shape index: {}]
  %s2 = inlined_call_operand.vmem [shape: f32[1,96], index: 2, kind: input, shape index: {}]
  %s3 = inlined_call_operand.vmem [shape: f32[64,64], index: 3, kind: input, shape index: {}]
  %s4 = inlined_call_operand.hbm [shape: f32[32,32], index: 4, kind: input, shape index: {}]
  %s5 = inlined_call_operand.vmem [shape: f32[1,32], index: 5, kind: input, shape index: {}]
  %s6 = inlined_call_operand.vmem [shape: f32[1,32], index: 6, kind: input, shape index: {}]
  %s7 = inlined_call_operand.vmem [shape: f32[1,32], index: 7, kind: input, shape index: {}]
  %s8 = inlined_call_operand.hbm [shape: f32[32,64], index: 8, kind: input, shape index: {}]
  %s9 = inlined_call_operand.hbm [shape: f32[1,64], index: 9, kind: input, shape index: {}]
  %s10 = inlined_call_operand.vmem [shape: f32[64,32], index: 10, kind: input, shape index: {}]
  %s11 = inlined_call_operand.hbm [shape: f32[1,32], index: 11, kind: input, shape index: {}]
  %s12 = inlined_call_operand.vmem [shape: f32[1,32], index: 12, kind: input, shape index: {}]
  %s13 = inlined_call_operand.vmem [shape: f32[1,32], index: 13, kind: input, shape index: {}]
  %s14 = inlined_call_operand.hbm [shape: f32[16,32], index: 14, kind: output, shape index: {}]
  %s15 = sld [smem:[#allocation0]]
  $region86: #{encoder_forward.1} parent=0
    _
  %s17 = ssub.s32 1, %s15
  %s18 = scalar_select 0, %s17, %s15
  $region1: #{encoder_forward.1} parent=0
    #allocation2 [shape = 'u8[8192]{0}', space=vmem, size = 0x2000, scoped, tag = 'input window, operand 0, single buffered']
    #allocation3 [shape = 's32[1]{0}', space=sflag, size = 0x4, scoped, tag = 'scoped memory for encoder_forward.1']
    #allocation4 [shape = 's32[1]{0}', space=sflag, size = 0x4, scoped, tag = 'scoped memory for encoder_forward.1']
    #allocation5 [shape = 'u8[16384]{0}', space=vmem, size = 0x4000, scoped, tag = 'input window, operand 4, single buffered']
    #allocation6 [shape = 's32[1]{0}', space=sflag, size = 0x4, scoped, tag = 'scoped memory for encoder_forward.1']
    #allocation7 [shape = 'u8[16384]{0}', space=vmem, size = 0x4000, scoped, tag = 'input window, operand 8, single buffered']
    #allocation8 [shape = 'u8[512]{0}', space=vmem, size = 0x400, scoped, tag = 'input window, operand 9, single buffered']
    #allocation9 [shape = 's32[1]{0}', space=sflag, size = 0x4, scoped, tag = 'scoped memory for encoder_forward.1']
    #allocation10 [shape = 'u8[512]{0}', space=vmem, size = 0x400, scoped, tag = 'input window, operand 11, single buffered']
    #allocation11 [shape = 'u8[8192]{0}', space=vmem, size = 0x2000, scoped, tag = 'output window, operand 0, single buffered']
    %19 = vsyncpa [#allocation3], 0
    %20 = vsyncpa [#allocation6], 0
    %21 = vsyncpa [#allocation9], 0
    %22 = vsyncpa [#allocation4], 0
    // Predicated region
    $region2: #{encoder_forward.1} parent=1 // pred_check
      _
    $region3: #{encoder_forward.1} parent=1 // pred_check_branch
      %24 = sbr.rel (0) target = $region5
    $region4: #{encoder_forward.1} parent=1 // pred_region
      %26 = vsyncadd [#allocation3], 0
      %s27 = sshll.u32 %s0, 4
      %s28 = int_to_ptr.hbm [resolvable:$true] %s27
      %s29 = sshll.u32 [#allocation2], 4
      %s30 = int_to_ptr.vmem [resolvable:$true] %s29
      %35 = dma.hbm_to_vmem [thread:$0]  %s28, 256, %s30, [#allocation3], 128, 128, 8
    $region5: #{encoder_forward.1} parent=1 // pred_fallthru
      _
    // Predicated region
    $region6: #{encoder_forward.1} parent=1 // pred_check
      _
    $region7: #{encoder_forward.1} parent=1 // pred_check_branch
      %37 = sbr.rel (0) target = $region9
    $region8: #{encoder_forward.1} parent=1 // pred_region
      _
    $region9: #{encoder_forward.1} parent=1 // pred_fallthru
      _
    // Predicated region
    $region10: #{encoder_forward.1} parent=1 // pred_check
      _
    $region11: #{encoder_forward.1} parent=1 // pred_check_branch
      %39 = sbr.rel (0) target = $region13
    $region12: #{encoder_forward.1} parent=1 // pred_region
      _
    $region13: #{encoder_forward.1} parent=1 // pred_fallthru
      _
    // Predicated region
    $region14: #{encoder_forward.1} parent=1 // pred_check
      _
    $region15: #{encoder_forward.1} parent=1 // pred_check_branch
      %41 = sbr.rel (0) target = $region17
    $region16: #{encoder_forward.1} parent=1 // pred_region
      _
    $region17: #{encoder_forward.1} parent=1 // pred_fallthru
      _
    // Predicated region
    $region18: #{encoder_forward.1} parent=1 // pred_check
      _
    $region19: #{encoder_forward.1} parent=1 // pred_check_branch
      %43 = sbr.rel (0) target = $region21
    $region20: #{encoder_forward.1} parent=1 // pred_region
      %45 = vsyncadd [#allocation6], 0
      %s46 = sshll.u32 %s4, 4
      %s47 = int_to_ptr.hbm [resolvable:$true] %s46
      %s48 = sshll.u32 [#allocation5], 4
      %s49 = int_to_ptr.vmem [resolvable:$true] %s48
      %54 = dma.hbm_to_vmem [thread:$0]  %s47, 512, %s49, [#allocation6], 128, 128, 8
    $region21: #{encoder_forward.1} parent=1 // pred_fallthru
      _
    // Predicated region
    $region22: #{encoder_forward.1} parent=1 // pred_check
      _
    $region23: #{encoder_forward.1} parent=1 // pred_check_branch
      %56 = sbr.rel (0) target = $region25
    $region24: #{encoder_forward.1} parent=1 // pred_region
      _
    $region25: #{encoder_forward.1} parent=1 // pred_fallthru
      _
    // Predicated region
    $region26: #{encoder_forward.1} parent=1 // pred_check
      _
    $region27: #{encoder_forward.1} parent=1 // pred_check_branch
      %58 = sbr.rel (0) target = $region29
    $region28: #{encoder_forward.1} parent=1 // pred_region
      _
    $region29: #{encoder_forward.1} parent=1 // pred_fallthru
      _
    // Predicated region
    $region30: #{encoder_forward.1} parent=1 // pred_check
      _
    $region31: #{encoder_forward.1} parent=1 // pred_check_branch
      %60 = sbr.rel (0) target = $region33
    $region32: #{encoder_forward.1} parent=1 // pred_region
      _
    $region33: #{encoder_forward.1} parent=1 // pred_fallthru
      _
    // Predicated region
    $region34: #{encoder_forward.1} parent=1 // pred_check
      _
    $region35: #{encoder_forward.1} parent=1 // pred_check_branch
      %62 = sbr.rel (0) target = $region37
    $region36: #{encoder_forward.1} parent=1 // pred_region
      %64 = vsyncadd [#allocation6], 0
      %s65 = sshll.u32 %s8, 4
      %s66 = int_to_ptr.hbm [resolvable:$true] %s65
      %s67 = sshll.u32 [#allocation7], 4
      %s68 = int_to_ptr.vmem [resolvable:$true] %s67
      %73 = dma.hbm_to_vmem [thread:$0]  %s66, 512, %s68, [#allocation6], 128, 128, 8
    $region37: #{encoder_forward.1} parent=1 // pred_fallthru
      _
    // Predicated region
    $region38: #{encoder_forward.1} parent=1 // pred_check
      _
    $region39: #{encoder_forward.1} parent=1 // pred_check_branch
      %75 = sbr.rel (0) target = $region41
    $region40: #{encoder_forward.1} parent=1 // pred_region
      %77 = vsyncadd [#allocation9], 0
      %s79 = sshll.u32 %s9, 4
      %s80 = int_to_ptr.hbm [resolvable:$true] %s79
      %s81 = sshll.u32 [#allocation8], 4
      %s82 = int_to_ptr.vmem [resolvable:$true] %s81
      %84 = dma.hbm_to_vmem [thread:$0]  %s80, 16, %s82, [#allocation9]
    $region41: #{encoder_forward.1} parent=1 // pred_fallthru
      _
    // Predicated region
    $region42: #{encoder_forward.1} parent=1 // pred_check
      _
    $region43: #{encoder_forward.1} parent=1 // pred_check_branch
      %86 = sbr.rel (0) target = $region45
    $region44: #{encoder_forward.1} parent=1 // pred_region
      _
    $region45: #{encoder_forward.1} parent=1 // pred_fallthru
      _
    // Predicated region
    $region46: #{encoder_forward.1} parent=1 // pred_check
      _
    $region47: #{encoder_forward.1} parent=1 // pred_check_branch
      %88 = sbr.rel (0) target = $region49
    $region48: #{encoder_forward.1} parent=1 // pred_region
      %90 = vsyncadd [#allocation9], 0
      %s92 = sshll.u32 %s11, 4
      %s93 = int_to_ptr.hbm [resolvable:$true] %s92
      %s94 = sshll.u32 [#allocation10], 4
      %s95 = int_to_ptr.vmem [resolvable:$true] %s94
      %97 = dma.hbm_to_vmem [thread:$0]  %s93, 16, %s95, [#allocation9]
    $region49: #{encoder_forward.1} parent=1 // pred_fallthru
      _
    // Predicated region
    $region50: #{encoder_forward.1} parent=1 // pred_check
      _
    $region51: #{encoder_forward.1} parent=1 // pred_check_branch
      %99 = sbr.rel (0) target = $region53
    $region52: #{encoder_forward.1} parent=1 // pred_region
      _
    $region53: #{encoder_forward.1} parent=1 // pred_fallthru
      _
    // Predicated region
    $region54: #{encoder_forward.1} parent=1 // pred_check
      _
    $region55: #{encoder_forward.1} parent=1 // pred_check_branch
      %101 = sbr.rel (0) target = $region57
    $region56: #{encoder_forward.1} parent=1 // pred_region
      _
    $region57: #{encoder_forward.1} parent=1 // pred_fallthru
      _
    // Predicated region
    $region58: #{encoder_forward.1} parent=1 // pred_check
      _
    $region59: #{encoder_forward.1} parent=1 // pred_check_branch
      %103 = sbr.rel (0) target = $region61
    $region60: #{encoder_forward.1} parent=1 // pred_region
      %105 = dma.done [#allocation3], 256
    $region61: #{encoder_forward.1} parent=1 // pred_fallthru
      _
    // Predicated region
    $region62: #{encoder_forward.1} parent=1 // pred_check
      _
    $region63: #{encoder_forward.1} parent=1 // pred_check_branch
      %107 = sbr.rel (0) target = $region65
    $region64: #{encoder_forward.1} parent=1 // pred_region
      %109 = dma.done [#allocation6], 512
    $region65: #{encoder_forward.1} parent=1 // pred_fallthru
      _
    // Predicated region
    $region66: #{encoder_forward.1} parent=1 // pred_check
      _
    $region67: #{encoder_forward.1} parent=1 // pred_check_branch
      %111 = sbr.rel (0) target = $region69
    $region68: #{encoder_forward.1} parent=1 // pred_region
      %113 = dma.done [#allocation6], 512
    $region69: #{encoder_forward.1} parent=1 // pred_fallthru
      _
    // Predicated region
    $region70: #{encoder_forward.1} parent=1 // pred_check
      _
    $region71: #{encoder_forward.1} parent=1 // pred_check_branch
      %115 = sbr.rel (0) target = $region73
    $region72: #{encoder_forward.1} parent=1 // pred_region
      %117 = dma.done [#allocation9], 16
    $region73: #{encoder_forward.1} parent=1 // pred_fallthru
      _
    // Predicated region
    $region74: #{encoder_forward.1} parent=1 // pred_check
      _
    $region75: #{encoder_forward.1} parent=1 // pred_check_branch
      %119 = sbr.rel (0) target = $region77
    $region76: #{encoder_forward.1} parent=1 // pred_region
      %121 = dma.done [#allocation9], 16
    $region77: #{encoder_forward.1} parent=1 // pred_fallthru
      _
    %v122 = vld [vmem:[#allocation2] sm:$0xff]
    %v123 = vld [vmem:[#allocation2 + $0x8] sm:$0xff]
    %v124 = vld [vmem:[%s1] sm:$0xff]
    %v125 = vld [vmem:[%s1 + $0x8] sm:$0xff]
    %v126 = vld [vmem:[%s1 + $0x10] sm:$0xff]
    %v127 = vld [vmem:[%s1 + $0x18] sm:$0xff]
    %v128 = vld [vmem:[%s2] sm:$0x1]
    %v130 = vperm.slane %v128, 0
    %vm132 = vcmask 261120
    %v134 = vsel %vm132, %v122, 0
    %v137 = vsel %vm132, %v123, 0
    %139 = vmatpush.msra.mxu0 0.0
    %140 = vmatpush.msra.mxu0 0.0
    %141 = vmatpush.msra.mxu0 0.0
    %142 = vmatpush.msra.mxu0 0.0
    %143 = vmatpush.msra.mxu0 0.0
    %144 = vmatpush.msra.mxu0 0.0
    %145 = vmatpush.msra.mxu0 0.0
    %146 = vmatpush.msra.mxu0 0.0
    %147 = vmatpush.msra.mxu0 0.0
    %148 = vmatpush.msra.mxu0 0.0
    %149 = vmatpush.msra.mxu0 0.0
    %150 = vmatpush.msra.mxu0 0.0
    %151 = vmatpush.msra.mxu0 %v127
    %152 = vmatpush.msra.mxu0 %v126
    %153 = vmatpush.msra.mxu0 %v125
    %154 = vmatpush.msra.mxu0 %v124
    %155 = vmatmul.f32.gmra.mxu0 %v134
    %v156 = vpop.f32.mrf.mxu0
    %v157 = vadd.f32 %v130, %v156
    %158 = vmatmul.f32.gmra.mxu0 %v137
    %v159 = vpop.f32.mrf.mxu0
    %v160 = vadd.f32 %v130, %v159
    %161 = vdwg.mxu0
    %v162 = vmul.f32 %v157, 0.35355338
    %v163 = vmul.f32 %v160, 0.35355338
    %166 = vrot.lane.b32.xlu0 %v162, 120
    %v167 = vpop.permute.xlu0 %166
    %168 = vrot.lane.b32.xlu0 %v163, 120
    %v169 = vpop.permute.xlu0 %168
    %170 = vrot.lane.b32.xlu0 %v162, 112
    %v171 = vpop.permute.xlu0 %170
    %172 = vrot.lane.b32.xlu0 %v163, 112
    %v173 = vpop.permute.xlu0 %172
    %174 = vrot.lane.b32.xlu0 %v162, 104
    %v175 = vpop.permute.xlu0 %174
    %176 = vrot.lane.b32.xlu0 %v163, 104
    %v177 = vpop.permute.xlu0 %176
    %180 = vrot.lane.b32.xlu0 %v157, 120
    %v181 = vpop.permute.xlu0 %180
    %182 = vrot.lane.b32.xlu0 %v160, 120
    %v183 = vpop.permute.xlu0 %182
    %184 = vrot.lane.b32.xlu0 %v157, 112
    %v185 = vpop.permute.xlu0 %184
    %186 = vrot.lane.b32.xlu0 %v160, 112
    %v187 = vpop.permute.xlu0 %186
    %188 = vrot.lane.b32.xlu0 %v157, 104
    %v189 = vpop.permute.xlu0 %188
    %190 = vrot.lane.b32.xlu0 %v160, 104
    %v191 = vpop.permute.xlu0 %190
    %v192 = vld [vmem:[%s3] sm:$0xff]
    %v193 = vld [vmem:[%s3 + $0x8] sm:$0xff]
    %v194 = vld [vmem:[%s3 + $0x10] sm:$0xff]
    %v195 = vld [vmem:[%s3 + $0x18] sm:$0xff]
    %v196 = vld [vmem:[%s3 + $0x20] sm:$0xff]
    %v197 = vld [vmem:[%s3 + $0x28] sm:$0xff]
    %v198 = vld [vmem:[%s3 + $0x30] sm:$0xff]
    %v199 = vld [vmem:[%s3 + $0x38] sm:$0xff]
    %200 = vrot.lane.b32.xlu0 %v157, 96
    %v201 = vpop.permute.xlu0 %200
    %202 = vrot.lane.b32.xlu0 %v160, 96
    %v203 = vpop.permute.xlu0 %202
    %204 = vrot.lane.b32.xlu0 %v181, 96
    %v205 = vpop.permute.xlu0 %204
    %206 = vrot.lane.b32.xlu0 %v183, 96
    %v207 = vpop.permute.xlu0 %206
    %208 = vrot.lane.b32.xlu0 %v185, 96
    %v209 = vpop.permute.xlu0 %208
    %210 = vrot.lane.b32.xlu0 %v187, 96
    %v211 = vpop.permute.xlu0 %210
    %212 = vrot.lane.b32.xlu0 %v189, 96
    %v213 = vpop.permute.xlu0 %212
    %214 = vrot.lane.b32.xlu0 %v191, 96
    %v215 = vpop.permute.xlu0 %214
    %vm216 = vcmask 64512
    %v217 = vsel %vm216, %v162, 0
    %v219 = vsel %vm216, %v163, 0
    %v221 = vsel %vm216, %v167, 0
    %v223 = vsel %vm216, %v169, 0
    %v225 = vsel %vm216, %v171, 0
    %v227 = vsel %vm216, %v173, 0
    %v229 = vsel %vm216, %v175, 0
    %v231 = vsel %vm216, %v177, 0
    %v233 = vsel %vm216, %v201, 0
    %v235 = vsel %vm216, %v203, 0
    %v237 = vsel %vm216, %v205, 0
    %v239 = vsel %vm216, %v207, 0
    %v241 = vsel %vm216, %v209, 0
    %v243 = vsel %vm216, %v211, 0
    %v245 = vsel %vm216, %v213, 0
    %v247 = vsel %vm216, %v215, 0
    %249 = vmatpush.xpose.msra.mxu0 0.0
    %250 = vmatpush.xpose.msra.mxu0 0.0
    %251 = vmatpush.xpose.msra.mxu0 0.0
    %252 = vmatpush.xpose.msra.mxu0 0.0
    %253 = vmatpush.xpose.msra.mxu0 0.0
    %254 = vmatpush.xpose.msra.mxu0 0.0
    %255 = vmatpush.xpose.msra.mxu0 0.0
    %256 = vmatpush.xpose.msra.mxu0 0.0
    %257 = vmatpush.xpose.msra.mxu0 %v247
    %258 = vmatpush.xpose.msra.mxu0 %v245
    %259 = vmatpush.xpose.msra.mxu0 %v243
    %260 = vmatpush.xpose.msra.mxu0 %v241
    %261 = vmatpush.xpose.msra.mxu0 %v239
    %262 = vmatpush.xpose.msra.mxu0 %v237
    %263 = vmatpush.xpose.msra.mxu0 %v235
    %264 = vmatpush.xpose.msra.mxu0 %v233
    %265 = vmatmul.f32.gmra.mxu0 %v217
    %v266 = vpop.f32.mrf.mxu0
    %v267 = vadd.f32 %v192, %v266
    %268 = vmatmul.f32.gmra.mxu0 %v219
    %v269 = vpop.f32.mrf.mxu0
    %v270 = vadd.f32 %v193, %v269
    %271 = vmatmul.f32.gmra.mxu0 %v221
    %v272 = vpop.f32.mrf.mxu0
    %v273 = vadd.f32 %v194, %v272
    %274 = vmatmul.f32.gmra.mxu0 %v223
    %v275 = vpop.f32.mrf.mxu0
    %v276 = vadd.f32 %v195, %v275
    %277 = vmatmul.f32.gmra.mxu0 %v225
    %v278 = vpop.f32.mrf.mxu0
    %v279 = vadd.f32 %v196, %v278
    %280 = vmatmul.f32.gmra.mxu0 %v227
    %v281 = vpop.f32.mrf.mxu0
    %v282 = vadd.f32 %v197, %v281
    %283 = vmatmul.f32.gmra.mxu0 %v229
    %v284 = vpop.f32.mrf.mxu0
    %v285 = vadd.f32 %v198, %v284
    %286 = vmatmul.f32.gmra.mxu0 %v231
    %v287 = vpop.f32.mrf.mxu0
    %v288 = vadd.f32 %v199, %v287
    %289 = vdwg.mxu0
    %vm290 = vcmask 523264
    %v291 = vsel %vm290, %v267, -inf
    %292 = vmax.xlane.f32.xlu0 %v291
    %v293 = vpop.xlane.xlu0 %292
    %v294 = vsel %vm290, %v270, -inf
    %295 = vmax.xlane.f32.xlu0 %v294
    %v296 = vpop.xlane.xlu0 %295
    %v297 = vsel %vm290, %v273, -inf
    %298 = vmax.xlane.f32.xlu0 %v297
    %v299 = vpop.xlane.xlu0 %298
    %v300 = vsel %vm290, %v276, -inf
    %301 = vmax.xlane.f32.xlu0 %v300
    %v302 = vpop.xlane.xlu0 %301
    %v303 = vsel %vm290, %v279, -inf
    %304 = vmax.xlane.f32.xlu0 %v303
    %v305 = vpop.xlane.xlu0 %304
    %v306 = vsel %vm290, %v282, -inf
    %307 = vmax.xlane.f32.xlu0 %v306
    %v308 = vpop.xlane.xlu0 %307
    %v309 = vsel %vm290, %v285, -inf
    %310 = vmax.xlane.f32.xlu0 %v309
    %v311 = vpop.xlane.xlu0 %310
    %v312 = vsel %vm290, %v288, -inf
    %313 = vmax.xlane.f32.xlu0 %v312
    %v314 = vpop.xlane.xlu0 %313
    %v315 = vsub.f32 %v267, %v293
    %v316 = vsub.f32 %v270, %v296
    %v317 = vsub.f32 %v273, %v299
    %v318 = vsub.f32 %v276, %v302
    %v319 = vsub.f32 %v279, %v305
    %v320 = vsub.f32 %v282, %v308
    %v321 = vsub.f32 %v285, %v311
    %v322 = vsub.f32 %v288, %v314
    %v323 = vmul.f32 %v315, 1.442695
    %v324 = vpow.pop %v323
    %v325 = vmul.f32 %v316, 1.442695
    %v326 = vpow.pop %v325
    %v327 = vmul.f32 %v317, 1.442695
    %v328 = vpow.pop %v327
    %v329 = vmul.f32 %v318, 1.442695
    %v330 = vpow.pop %v329
    %v331 = vmul.f32 %v319, 1.442695
    %v332 = vpow.pop %v331
    %v333 = vmul.f32 %v320, 1.442695
    %v334 = vpow.pop %v333
    %v335 = vmul.f32 %v321, 1.442695
    %v336 = vpow.pop %v335
    %v337 = vmul.f32 %v322, 1.442695
    %v338 = vpow.pop %v337
    %v339 = vsel %vm290, %v324, 0.0
    %340 = vadd.xlane.f32.xlu0 %v339
    %v341 = vpop.xlane.xlu0 %340
    %v342 = vsel %vm290, %v326, 0.0
    %343 = vadd.xlane.f32.xlu0 %v342
    %v344 = vpop.xlane.xlu0 %343
    %v345 = vsel %vm290, %v328, 0.0
    %346 = vadd.xlane.f32.xlu0 %v345
    %v347 = vpop.xlane.xlu0 %346
    %v348 = vsel %vm290, %v330, 0.0
    %349 = vadd.xlane.f32.xlu0 %v348
    %v350 = vpop.xlane.xlu0 %349
    %v351 = vsel %vm290, %v332, 0.0
    %352 = vadd.xlane.f32.xlu0 %v351
    %v353 = vpop.xlane.xlu0 %352
    %v354 = vsel %vm290, %v334, 0.0
    %355 = vadd.xlane.f32.xlu0 %v354
    %v356 = vpop.xlane.xlu0 %355
    %v357 = vsel %vm290, %v336, 0.0
    %358 = vadd.xlane.f32.xlu0 %v357
    %v359 = vpop.xlane.xlu0 %358
    %v360 = vsel %vm290, %v338, 0.0
    %361 = vadd.xlane.f32.xlu0 %v360
    %v362 = vpop.xlane.xlu0 %361
    %v363 = vrcp.pop %v341
    %v364 = vrcp.pop %v344
    %v365 = vrcp.pop %v347
    %v366 = vrcp.pop %v350
    %v367 = vrcp.pop %v353
    %v368 = vrcp.pop %v356
    %v369 = vrcp.pop %v359
    %v370 = vrcp.pop %v362
    %v371 = vmul.f32 %v324, %v363
    %v372 = vmul.f32 %v326, %v364
    %v373 = vmul.f32 %v328, %v365
    %v374 = vmul.f32 %v330, %v366
    %v375 = vmul.f32 %v332, %v367
    %v376 = vmul.f32 %v334, %v368
    %v377 = vmul.f32 %v336, %v369
    %v378 = vmul.f32 %v338, %v370
    %379 = vrot.lane.b32.xlu0 %v157, 64
    %v380 = vpop.permute.xlu0 %379
    %381 = vrot.lane.b32.xlu0 %v160, 64
    %v382 = vpop.permute.xlu0 %381
    %383 = vrot.lane.b32.xlu0 %v181, 64
    %v384 = vpop.permute.xlu0 %383
    %385 = vrot.lane.b32.xlu0 %v183, 64
    %v386 = vpop.permute.xlu0 %385
    %387 = vrot.lane.b32.xlu0 %v185, 64
    %v388 = vpop.permute.xlu0 %387
    %389 = vrot.lane.b32.xlu0 %v187, 64
    %v390 = vpop.permute.xlu0 %389
    %391 = vrot.lane.b32.xlu0 %v189, 64
    %v392 = vpop.permute.xlu0 %391
    %393 = vrot.lane.b32.xlu0 %v191, 64
    %v394 = vpop.permute.xlu0 %393
    %v404 = vsel %vm290, %v371, 0
    %v407 = vsel %vm290, %v372, 0
    %v410 = vsel %vm290, %v373, 0
    %v413 = vsel %vm290, %v374, 0
    %v416 = vsel %vm290, %v375, 0
    %v419 = vsel %vm290, %v376, 0
    %v422 = vsel %vm290, %v377, 0
    %v425 = vsel %vm290, %v378, 0
    %427 = vmatpush.msra.mxu0 0.0
    %428 = vmatpush.msra.mxu0 0.0
    %429 = vmatpush.msra.mxu0 0.0
    %430 = vmatpush.msra.mxu0 0.0
    %431 = vmatpush.msra.mxu0 0.0
    %432 = vmatpush.msra.mxu0 0.0
    %433 = vmatpush.msra.mxu0 0.0
    %434 = vmatpush.msra.mxu0 0.0
    %435 = vmatpush.msra.mxu0 %v394
    %436 = vmatpush.msra.mxu0 %v392
    %437 = vmatpush.msra.mxu0 %v390
    %438 = vmatpush.msra.mxu0 %v388
    %439 = vmatpush.msra.mxu0 %v386
    %440 = vmatpush.msra.mxu0 %v384
    %441 = vmatpush.msra.mxu0 %v382
    %442 = vmatpush.msra.mxu0 %v380
    %443 = vmatmul.f32.gmra.mxu0 %v404
    %v444 = vpop.f32.mrf.mxu0
    %v445 = vadd.f32 0.0, %v444
    %446 = vmatmul.f32.gmra.mxu0 %v407
    %v447 = vpop.f32.mrf.mxu0
    %v448 = vadd.f32 0.0, %v447
    %449 = vmatmul.f32.gmra.mxu0 %v410
    %v450 = vpop.f32.mrf.mxu0
    %v451 = vadd.f32 0.0, %v450
    %452 = vmatmul.f32.gmra.mxu0 %v413
    %v453 = vpop.f32.mrf.mxu0
    %v454 = vadd.f32 0.0, %v453
    %455 = vmatmul.f32.gmra.mxu0 %v416
    %v456 = vpop.f32.mrf.mxu0
    %v457 = vadd.f32 0.0, %v456
    %458 = vmatmul.f32.gmra.mxu0 %v419
    %v459 = vpop.f32.mrf.mxu0
    %v460 = vadd.f32 0.0, %v459
    %461 = vmatmul.f32.gmra.mxu0 %v422
    %v462 = vpop.f32.mrf.mxu0
    %v463 = vadd.f32 0.0, %v462
    %464 = vmatmul.f32.gmra.mxu0 %v425
    %v465 = vpop.f32.mrf.mxu0
    %v466 = vadd.f32 0.0, %v465
    %467 = vdwg.mxu0
    %470 = vrot.lane.b32.xlu0 %v451, 8
    %v471 = vpop.permute.xlu0 %470
    %472 = vrot.lane.b32.xlu0 %v454, 8
    %v473 = vpop.permute.xlu0 %472
    %478 = vrot.lane.b32.xlu0 %v457, 16
    %v479 = vpop.permute.xlu0 %478
    %480 = vrot.lane.b32.xlu0 %v460, 16
    %v481 = vpop.permute.xlu0 %480
    %486 = vrot.lane.b32.xlu0 %v463, 24
    %v487 = vpop.permute.xlu0 %486
    %488 = vrot.lane.b32.xlu0 %v466, 24
    %v489 = vpop.permute.xlu0 %488
    %v492 = vsel %vm216, %v445, %v471
    %v493 = vsel %vm216, %v448, %v473
    %vm494 = vcmask 130048
    %v495 = vsel %vm494, %v492, %v479
    %v496 = vsel %vm494, %v493, %v481
    %vm497 = vcmask 195584
    %v498 = vsel %vm497, %v495, %v487
    %v499 = vsel %vm497, %v496, %v489
    %v500 = vld [vmem:[#allocation5] sm:$0xff]
    %v501 = vld [vmem:[#allocation5 + $0x8] sm:$0xff]
    %v502 = vld [vmem:[#allocation5 + $0x10] sm:$0xff]
    %v503 = vld [vmem:[#allocation5 + $0x18] sm:$0xff]
    %v504 = vld [vmem:[%s5] sm:$0x1]
    %v506 = vperm.slane %v504, 0
    %v509 = vsel %vm132, %v498, 0
    %v512 = vsel %vm132, %v499, 0
    %514 = vmatpush.msra.mxu0 0.0
    %515 = vmatpush.msra.mxu0 0.0
    %516 = vmatpush.msra.mxu0 0.0
    %517 = vmatpush.msra.mxu0 0.0
    %518 = vmatpush.msra.mxu0 0.0
    %519 = vmatpush.msra.mxu0 0.0
    %520 = vmatpush.msra.mxu0 0.0
    %521 = vmatpush.msra.mxu0 0.0
    %522 = vmatpush.msra.mxu0 0.0
    %523 = vmatpush.msra.mxu0 0.0
    %524 = vmatpush.msra.mxu0 0.0
    %525 = vmatpush.msra.mxu0 0.0
    %526 = vmatpush.msra.mxu0 %v503
    %527 = vmatpush.msra.mxu0 %v502
    %528 = vmatpush.msra.mxu0 %v501
    %529 = vmatpush.msra.mxu0 %v500
    %530 = vmatmul.f32.gmra.mxu0 %v509
    %v531 = vpop.f32.mrf.mxu0
    %v532 = vadd.f32 %v506, %v531
    %533 = vmatmul.f32.gmra.mxu0 %v512
    %v534 = vpop.f32.mrf.mxu0
    %v535 = vadd.f32 %v506, %v534
    %536 = vdwg.mxu0
    %v537 = vadd.f32 %v532, %v122
    %v538 = vadd.f32 %v535, %v123
    %v539 = vld [vmem:[%s6] sm:$0x1]
    %v540 = vld [vmem:[%s7] sm:$0x1]
    %v541 = vsel %vm132, %v537, 0.0
    %542 = vadd.xlane.f32.xlu0 %v541
    %v543 = vpop.xlane.xlu0 %542
    %v544 = vsel %vm132, %v538, 0.0
    %545 = vadd.xlane.f32.xlu0 %v544
    %v546 = vpop.xlane.xlu0 %545
    %v547 = vrcp.pop 32.0
    %v548 = vmul.f32 32.0, %v547
    %v549 = vsub.f32 1.0, %v548
    %v550 = vmul.f32 %v547, %v549
    %v551 = vadd.f32 %v547, %v550
    %vm552 = vweird.f32 %v547
    %v553 = vsel %vm552, %v547, %v551
    %v554 = vmul.f32 %v543, %v553
    %v555 = vmul.f32 %v546, %v553
    %v556 = vsub.f32 %v537, %v554
    %v557 = vsub.f32 %v538, %v555
    %v558 = vmul.f32 %v556, %v556
    %v559 = vmul.f32 %v557, %v557
    %v560 = vsel %vm132, %v558, 0.0
    %561 = vadd.xlane.f32.xlu0 %v560
    %v562 = vpop.xlane.xlu0 %561
    %v563 = vsel %vm132, %v559, 0.0
    %564 = vadd.xlane.f32.xlu0 %v563
    %v565 = vpop.xlane.xlu0 %564
    %v566 = vmul.f32 %v562, %v553
    %v567 = vmul.f32 %v565, %v553
    %v568 = vadd.f32 %v566, 1e-05
    %v569 = vadd.f32 %v567, 1e-05
    %v570 = vrsqrt.pop %v568
    %v571 = vmul.f32 %v570, %v568
    %v572 = vmul.f32 %v571, %v570
    %v573 = vmul.f32 0.5, %v572
    %v574 = vsub.f32 1.5, %v573
    %v575 = vmul.f32 %v570, %v574
    %vm576 = vweird.f32 %v568
    %vm577 = vweird.f32 %v570
    %vm578 = vmor %vm576, %vm577
    %v579 = vsel %vm578, %v570, %v575
    %v580 = vrsqrt.pop %v569
    %v581 = vmul.f32 %v580, %v569
    %v582 = vmul.f32 %v581, %v580
    %v583 = vmul.f32 0.5, %v582
    %v584 = vsub.f32 1.5, %v583
    %v585 = vmul.f32 %v580, %v584
    %vm586 = vweird.f32 %v569
    %vm587 = vweird.f32 %v580
    %vm588 = vmor %vm586, %vm587
    %v589 = vsel %vm588, %v580, %v585
    %v590 = vmul.f32 %v556, %v579
    %v591 = vmul.f32 %v557, %v589
    %v593 = vperm.slane %v539, 0
    %v595 = vmul.f32 %v590, %v593
    %v596 = vmul.f32 %v591, %v593
    %v598 = vperm.slane %v540, 0
    %v600 = vadd.f32 %v595, %v598
    %v601 = vadd.f32 %v596, %v598
    %v602 = vld [vmem:[#allocation7] sm:$0xff]
    %v603 = vld [vmem:[#allocation7 + $0x8] sm:$0xff]
    %v604 = vld [vmem:[#allocation7 + $0x10] sm:$0xff]
    %v605 = vld [vmem:[#allocation7 + $0x18] sm:$0xff]
    %v606 = vld [vmem:[#allocation8] sm:$0x1]
    %v608 = vperm.slane %v606, 0
    %v611 = vsel %vm132, %v600, 0
    %v614 = vsel %vm132, %v601, 0
    %616 = vmatpush.msra.mxu0 0.0
    %617 = vmatpush.msra.mxu0 0.0
    %618 = vmatpush.msra.mxu0 0.0
    %619 = vmatpush.msra.mxu0 0.0
    %620 = vmatpush.msra.mxu0 0.0
    %621 = vmatpush.msra.mxu0 0.0
    %622 = vmatpush.msra.mxu0 0.0
    %623 = vmatpush.msra.mxu0 0.0
    %624 = vmatpush.msra.mxu0 0.0
    %625 = vmatpush.msra.mxu0 0.0
    %626 = vmatpush.msra.mxu0 0.0
    %627 = vmatpush.msra.mxu0 0.0
    %628 = vmatpush.msra.mxu0 %v605
    %629 = vmatpush.msra.mxu0 %v604
    %630 = vmatpush.msra.mxu0 %v603
    %631 = vmatpush.msra.mxu0 %v602
    %632 = vmatmul.f32.gmra.mxu0 %v611
    %v633 = vpop.f32.mrf.mxu0
    %v634 = vadd.f32 %v608, %v633
    %635 = vmatmul.f32.gmra.mxu0 %v614
    %v636 = vpop.f32.mrf.mxu0
    %v637 = vadd.f32 %v608, %v636
    %638 = vdwg.mxu0
    %v639 = vmax.f32 %v634, 0.0
    %v640 = vmax.f32 %v637, 0.0
    %v641 = vld [vmem:[%s10] sm:$0xff]
    %v642 = vld [vmem:[%s10 + $0x8] sm:$0xff]
    %v643 = vld [vmem:[%s10 + $0x10] sm:$0xff]
    %v644 = vld [vmem:[%s10 + $0x18] sm:$0xff]
    %v645 = vld [vmem:[%s10 + $0x20] sm:$0xff]
    %v646 = vld [vmem:[%s10 + $0x28] sm:$0xff]
    %v647 = vld [vmem:[%s10 + $0x30] sm:$0xff]
    %v648 = vld [vmem:[%s10 + $0x38] sm:$0xff]
    %v649 = vld [vmem:[#allocation10] sm:$0x1]
    %v651 = vperm.slane %v649, 0
    %v654 = vsel %vm290, %v639, 0
    %v657 = vsel %vm290, %v640, 0
    %659 = vmatpush.msra.mxu0 0.0
    %660 = vmatpush.msra.mxu0 0.0
    %661 = vmatpush.msra.mxu0 0.0
    %662 = vmatpush.msra.mxu0 0.0
    %663 = vmatpush.msra.mxu0 0.0
    %664 = vmatpush.msra.mxu0 0.0
    %665 = vmatpush.msra.mxu0 0.0
    %666 = vmatpush.msra.mxu0 0.0
    %667 = vmatpush.msra.mxu0 %v648
    %668 = vmatpush.msra.mxu0 %v647
    %669 = vmatpush.msra.mxu0 %v646
    %670 = vmatpush.msra.mxu0 %v645
    %671 = vmatpush.msra.mxu0 %v644
    %672 = vmatpush.msra.mxu0 %v643
    %673 = vmatpush.msra.mxu0 %v642
    %674 = vmatpush.msra.mxu0 %v641
    %675 = vmatmul.f32.gmra.mxu0 %v654
    %v676 = vpop.f32.mrf.mxu0
    %v677 = vadd.f32 %v651, %v676
    %678 = vmatmul.f32.gmra.mxu0 %v657
    %v679 = vpop.f32.mrf.mxu0
    %v680 = vadd.f32 %v651, %v679
    %681 = vdwg.mxu0
    %v682 = vadd.f32 %v677, %v600
    %v683 = vadd.f32 %v680, %v601
    %v684 = vld [vmem:[%s12] sm:$0x1]
    %v685 = vld [vmem:[%s13] sm:$0x1]
    %v686 = vsel %vm132, %v682, 0.0
    %687 = vadd.xlane.f32.xlu0 %v686
    %v688 = vpop.xlane.xlu0 %687
    %v689 = vsel %vm132, %v683, 0.0
    %690 = vadd.xlane.f32.xlu0 %v689
    %v691 = vpop.xlane.xlu0 %690
    %v692 = vmul.f32 %v688, %v553
    %v693 = vmul.f32 %v691, %v553
    %v694 = vsub.f32 %v682, %v692
    %v695 = vsub.f32 %v683, %v693
    %v696 = vmul.f32 %v694, %v694
    %v697 = vmul.f32 %v695, %v695
    %v698 = vsel %vm132, %v696, 0.0
    %699 = vadd.xlane.f32.xlu0 %v698
    %v700 = vpop.xlane.xlu0 %699
    %v701 = vsel %vm132, %v697, 0.0
    %702 = vadd.xlane.f32.xlu0 %v701
    %v703 = vpop.xlane.xlu0 %702
    %v704 = vmul.f32 %v700, %v553
    %v705 = vmul.f32 %v703, %v553
    %v706 = vadd.f32 %v704, 1e-05
    %v707 = vadd.f32 %v705, 1e-05
    %v708 = vrsqrt.pop %v706
    %v709 = vmul.f32 %v708, %v706
    %v710 = vmul.f32 %v709, %v708
    %v711 = vmul.f32 0.5, %v710
    %v712 = vsub.f32 1.5, %v711
    %v713 = vmul.f32 %v708, %v712
    %vm714 = vweird.f32 %v706
    %vm715 = vweird.f32 %v708
    %vm716 = vmor %vm714, %vm715
    %v717 = vsel %vm716, %v708, %v713
    %v718 = vrsqrt.pop %v707
    %v719 = vmul.f32 %v718, %v707
    %v720 = vmul.f32 %v719, %v718
    %v721 = vmul.f32 0.5, %v720
    %v722 = vsub.f32 1.5, %v721
    %v723 = vmul.f32 %v718, %v722
    %vm724 = vweird.f32 %v707
    %vm725 = vweird.f32 %v718
    %vm726 = vmor %vm724, %vm725
    %v727 = vsel %vm726, %v718, %v723
    %v728 = vmul.f32 %v694, %v717
    %v729 = vmul.f32 %v695, %v727
    %v731 = vperm.slane %v684, 0
    %v733 = vmul.f32 %v728, %v731
    %v734 = vmul.f32 %v729, %v731
    %v736 = vperm.slane %v685, 0
    %v738 = vadd.f32 %v733, %v736
    %v739 = vadd.f32 %v734, %v736
    %740 = vst.msk [vmem:[#allocation11] sm:$0xff] %vm132, %v738
    %741 = vst.msk [vmem:[#allocation11 + $0x8] sm:$0xff] %vm132, %v739
    // Predicated region
    $region78: #{encoder_forward.1} parent=1 // pred_check
      _
    $region79: #{encoder_forward.1} parent=1 // pred_check_branch
      %743 = sbr.rel (0) target = $region81
    $region80: #{encoder_forward.1} parent=1 // pred_region
      %745 = vsyncadd [#allocation4], 0
      %s746 = sshll.u32 [#allocation11], 4
      %s747 = int_to_ptr.vmem [resolvable:$true] %s746
      %s748 = sshll.u32 %s14, 4
      %s749 = int_to_ptr.hbm [resolvable:$true] %s748
      %754 = dma.vmem_to_hbm [thread:$0]  %s747, 256, %s749, [#allocation4], 128, 128, 8
    $region81: #{encoder_forward.1} parent=1 // pred_fallthru
      _
    // Predicated region
    $region82: #{encoder_forward.1} parent=1 // pred_check
      _
    $region83: #{encoder_forward.1} parent=1 // pred_check_branch
      %756 = sbr.rel (0) target = $region85
    $region84: #{encoder_forward.1} parent=1 // pred_region
      %758 = dma.done [#allocation4], 256
    $region85: #{encoder_forward.1} parent=1 // pred_fallthru
      _
    %759 = vsyncpa [#allocation3], 1
    %760 = vsyncpa [#allocation6], 1
    %761 = vsyncpa [#allocation9], 1
    %762 = vsyncpa [#allocation4], 1

</llo_original>
